<compile_context>
chip_gen: v7x
topology: tpu7x:2x2x1
jax: 0.10.0
libtpu: 0.0.40
codegen_flags: <defaults>
</compile_context>

<pallas_src>
import jax
import jax.numpy as jnp
from jax.experimental import pallas as pl
from jax.experimental.pallas import tpu as pltpu


def identity_kernel(x_ref, o_ref):
    # DummyLayerNorm.forward(x) == x : straight VMEM tile copy, no compute.
    o_ref[...] = x_ref[...]


def dummy_layer_norm(x, *, tm=512):
    """Identity pass-through (DummyLayerNorm.forward). x: (..., E)."""
    orig_shape = x.shape
    E = orig_shape[-1]
    M = 1
    for d in orig_shape[:-1]:
        M *= d
    x2 = x.reshape(M, E)

    # Row tile: as large as allowed (biggest-tile-that-fits rule), clamped to
    # M for tiny inputs.  Must be a multiple of 8 (f32 sublane packing) unless
    # it equals the full row extent; E = 768 is already a multiple of 128.
    tm = min(tm, M)
    if tm != M and tm % 8 != 0:
        tm = max(8, (tm // 8) * 8)
    grid = (pl.cdiv(M, tm),)

    out = pl.pallas_call(
        identity_kernel,
        out_shape=jax.ShapeDtypeStruct((M, E), x.dtype),
        grid_spec=pltpu.PrefetchScalarGridSpec(
            num_scalar_prefetch=0,
            grid=grid,
            in_specs=[pl.BlockSpec((tm, E), lambda i: (i, 0))],
            out_specs=pl.BlockSpec((tm, E), lambda i: (i, 0)),
        ),
        compiler_params=pltpu.CompilerParams(
            # Parallel row axis -> megacore sharding on v7x; no-op on v5e/v6e.
            dimension_semantics=("parallel",),
        ),
    )(x2)

    return out.reshape(orig_shape)


if __name__ == "__main__":
    # Shape consistent with the module's example: x = torch.randn(2, 4, 768)
    B, S, E = 2, 4, 768

    key = jax.random.PRNGKey(0)
    x = jax.random.normal(key, (B, S, E), dtype=jnp.float32)

    y = dummy_layer_norm(x)
    y = jax.block_until_ready(y)

    assert y.shape == x.shape
    assert y.dtype == x.dtype
    # Identity must be bit-exact.
    assert bool(jnp.array_equal(y, x)), "DummyLayerNorm kernel must return x unchanged"

    print("KERNEL_OK")
</pallas_src>

<mosaic_0001>
module attributes {stable_mosaic.version = 11 : i64} {
  func.func @identity_kernel(%arg0: i32, %arg1: memref<8x768xf32, #tpu.memory_space<vmem>>, %arg2: memref<8x768xf32, #tpu.memory_space<vmem>>) attributes {dimension_semantics = [#tpu.dimension_semantics<parallel>], iteration_bounds = array<i64: 1>, scalar_prefetch = 0 : i64, scratch_operands = 0 : i64, tpu.core_type = #tpu.core_type<tc>, window_params = [{transform_indices = @transform_0, window_bounds = array<i64: 8, 768>}, {transform_indices = @transform_1, window_bounds = array<i64: 8, 768>}]} {
    %c0 = arith.constant 0 : index
    %c0_0 = arith.constant 0 : index
    %0 = vector.load %arg1[%c0, %c0_0] : memref<8x768xf32, #tpu.memory_space<vmem>>, vector<8x768xf32>
    %c0_1 = arith.constant 0 : index
    %c0_2 = arith.constant 0 : index
    %1 = vector.load %arg2[%c0_1, %c0_2] : memref<8x768xf32, #tpu.memory_space<vmem>>, vector<8x768xf32>
    tpu.vector_store %arg2[%c0_1, %c0_2], %0 {strides = array<i32>} : memref<8x768xf32, #tpu.memory_space<vmem>>, vector<8x768xf32>,
    return
  }
  func.func @transform_0(%arg0: i32) -> (i32, i32) {
    %c0_i32 = arith.constant 0 : i32
    %c0_i32_0 = arith.constant 0 : i32
    return %arg0, %c0_i32 : i32, i32
  }
  func.func @transform_1(%arg0: i32) -> (i32, i32) {
    %c0_i32 = arith.constant 0 : i32
    %c0_i32_0 = arith.constant 0 : i32
    return %arg0, %c0_i32 : i32, i32
  }
}

</mosaic_0001>

<llo_original>
// kernel: tpu_custom_call.1
$region0: #{tpu_custom_call.1}
  #allocation0 [shape = 'u32[]', space=smem, size = 0x4, offset = 0x4, fixed_abs, tag = 'smem constant byte address 0x4 - core index']
  #allocation1 [shape = 'u32[144,128]{1,0:T(1,128)}', space=vmem, size = 0x12000, scoped, tag = 'internal scratch']
  %s0 = inlined_call_operand.hbm [shape: f32[8,768], index: 0, kind: input, shape index: {}]
  %s1 = inlined_call_operand.hbm [shape: f32[8,768], index: 1, kind: output, shape index: {}]
  %s2 = sld [smem:[#allocation0]]
  $region18: #{tpu_custom_call.1} parent=0
    _
  %s4 = ssub.s32 1, %s2
  %s5 = scalar_select 0, %s4, %s2
  $region1: #{tpu_custom_call.1} parent=0
    #allocation2 [shape = 'u8[24576]{0}', space=vmem, size = 0x6000, scoped, tag = 'input window, operand 0, single buffered']
    #allocation3 [shape = 's32[1]{0}', space=sflag, size = 0x4, scoped, tag = 'scoped memory for tpu_custom_call.1']
    #allocation4 [shape = 's32[1]{0}', space=sflag, size = 0x4, scoped, tag = 'scoped memory for tpu_custom_call.1']
    #allocation5 [shape = 'u8[24576]{0}', space=vmem, size = 0x6000, scoped, tag = 'output window, operand 0, single buffered']
    %6 = vsyncpa [#allocation3], 0
    %7 = vsyncpa [#allocation4], 0
    // Predicated region
    $region2: #{tpu_custom_call.1} parent=1 // pred_check
      _
    $region3: #{tpu_custom_call.1} parent=1 // pred_check_branch
      %9 = sbr.rel (0) target = $region5
    $region4: #{tpu_custom_call.1} parent=1 // pred_region
      %s11 = ssub.s32 768, 768
      %12 = vsyncadd [#allocation3], %s11
      %s14 = sshll.u32 [#allocation2], 4
      %s15 = int_to_ptr.vmem [resolvable:$true] %s14
      %17 = dma.hbm_to_vmem [thread:$0]  %s0, 768, %s15, [#allocation3]
    $region5: #{tpu_custom_call.1} parent=1 // pred_fallthru
      _
    // Predicated region
    $region6: #{tpu_custom_call.1} parent=1 // pred_check
      _
    $region7: #{tpu_custom_call.1} parent=1 // pred_check_branch
      %19 = sbr.rel (0) target = $region9
    $region8: #{tpu_custom_call.1} parent=1 // pred_region
      %20 = dma.done [#allocation3], 768
    $region9: #{tpu_custom_call.1} parent=1 // pred_fallthru
      _
    %v21 = vld [vmem:[#allocation2] sm:$0xff]
    %v22 = vld [vmem:[#allocation2 + $0x8] sm:$0xff]
    %v23 = vld [vmem:[#allocation2 + $0x10] sm:$0xff]
    %v24 = vld [vmem:[#allocation2 + $0x18] sm:$0xff]
    %v25 = vld [vmem:[#allocation2 + $0x20] sm:$0xff]
    %v26 = vld [vmem:[#allocation2 + $0x28] sm:$0xff]
    %27 = vst [vmem:[#allocation5] sm:$0xff] %v21
    %28 = vst [vmem:[#allocation5 + $0x8] sm:$0xff] %v22
    %29 = vst [vmem:[#allocation5 + $0x10] sm:$0xff] %v23
    %30 = vst [vmem:[#allocation5 + $0x18] sm:$0xff] %v24
    %31 = vst [vmem:[#allocation5 + $0x20] sm:$0xff] %v25
    %32 = vst [vmem:[#allocation5 + $0x28] sm:$0xff] %v26
    // Predicated region
    $region10: #{tpu_custom_call.1} parent=1 // pred_check
      _
    $region11: #{tpu_custom_call.1} parent=1 // pred_check_branch
      %34 = sbr.rel (0) target = $region13
    $region12: #{tpu_custom_call.1} parent=1 // pred_region
      %s36 = ssub.s32 768, 768
      %37 = vsyncadd [#allocation4], %s36
      %s39 = sshll.u32 [#allocation5], 4
      %s40 = int_to_ptr.vmem [resolvable:$true] %s39
      %42 = dma.vmem_to_hbm [thread:$0]  %s40, 768, %s1, [#allocation4]
    $region13: #{tpu_custom_call.1} parent=1 // pred_fallthru
      _
    // Predicated region
    $region14: #{tpu_custom_call.1} parent=1 // pred_check
      _
    $region15: #{tpu_custom_call.1} parent=1 // pred_check_branch
      %44 = sbr.rel (0) target = $region17
    $region16: #{tpu_custom_call.1} parent=1 // pred_region
      %45 = dma.done [#allocation4], 768
    $region17: #{tpu_custom_call.1} parent=1 // pred_fallthru
      _
    %46 = vsyncpa [#allocation3], 1
    %47 = vsyncpa [#allocation4], 1

</llo_original>
